<compile_context>
chip_gen: v5e
topology: v5e:2x2
jax: 0.10.0
libtpu: 0.0.40
codegen_flags: <defaults>
</compile_context>

<pallas_src>
import functools

import jax
import jax.numpy as jnp
from jax.experimental import pallas as pl
from jax.experimental.pallas import tpu as pltpu

LANE = 128                        # pad the class dim up to this (lane-dense stores)
_BF16_SUBLANE = 16                # bf16 packs 16 rows per 32-bit sublane group
_MXU_ROWS = 256                   # M-dim granule for large batch tiles
_SMALL_TILE_N = 256               # below this, take the whole batch in one tile
_FALLBACK_VMEM_BYTES = 64 << 20   # most conservative current generation (v7x per-TC)


def _round_up(x, m):
    return (x + m - 1) // m * m


@functools.lru_cache(maxsize=1)
def _physical_vmem_bytes():
    """Per-TensorCore VMEM capacity (v5e/v6e: 128 MiB, v7x: 64 MiB)."""
    try:
        return int(pltpu.get_tpu_info().vmem_capacity_bytes)
    except Exception:  # hardware query unavailable (e.g. interpret / old jax)
        return _FALLBACK_VMEM_BYTES


@functools.lru_cache(maxsize=1)
def _single_buffered_invariants_supported():
    """One-time capability probe (deterministic across calls): can grid-invariant
    operands be single-buffered via pipeline_mode=pl.Buffered(1)?"""
    if not hasattr(pl, "Buffered"):
        return False
    try:
        pl.BlockSpec((8, 128), lambda i: (0, 0),
                     pipeline_mode=pl.Buffered(buffer_count=1))
        return True
    except TypeError:
        return False


def _invariant_spec(shape):
    """BlockSpec for a grid-invariant operand: full tensor, constant index_map,
    single-buffered when the running jax supports it (checked once)."""
    index_map = lambda i: (0,) * len(shape)
    if _single_buffered_invariants_supported():
        return pl.BlockSpec(shape, index_map,
                            pipeline_mode=pl.Buffered(buffer_count=1))
    return pl.BlockSpec(shape, index_map)


def mlp_kernel(x_ref,
               w1_ref, b1_ref,
               w2_ref, b2_ref,
               w3_ref, b3_ref,
               w4_ref, b4_ref,
               o_ref):
    """Whole forward pass for one (tile_n, D) batch tile, fused in VMEM."""
    # bf16 MXU inputs (no-op if x already bf16), f32 accumulation.
    x = x_ref[...].astype(jnp.bfloat16)

    h = jnp.dot(x, w1_ref[...], preferred_element_type=jnp.float32) + b1_ref[...]
    h = jnp.maximum(h, 0.0).astype(jnp.bfloat16)

    h = jnp.dot(h, w2_ref[...], preferred_element_type=jnp.float32) + b2_ref[...]
    h = jnp.maximum(h, 0.0).astype(jnp.bfloat16)

    h = jnp.dot(h, w3_ref[...], preferred_element_type=jnp.float32) + b3_ref[...]
    h = jnp.maximum(h, 0.0).astype(jnp.bfloat16)

    logits = jnp.dot(h, w4_ref[...], preferred_element_type=jnp.float32) + b4_ref[...]
    # bf16 writeback (lane-dense, 128-wide) halves the dominant HBM stream.
    o_ref[...] = logits.astype(o_ref.dtype)


def prepare_params(ref_params):
    """f32 reference params -> kernel-ready operands: bf16 (in, out) weights,
    f32 (1, out) biases; layer 4 zero-padded to a multiple of 128 output lanes
    (full MXU columns + lane-dense stores)."""
    c = ref_params["w4"].shape[1]
    c_pad = _round_up(max(c, LANE), LANE)
    out = {}
    for li in (1, 2, 3, 4):
        w = ref_params[f"w{li}"]
        b = ref_params[f"b{li}"].reshape(1, -1)
        if li == 4 and c_pad != c:
            w = jnp.pad(w, ((0, 0), (0, c_pad - c)))
            b = jnp.pad(b, ((0, 0), (0, c_pad - c)))
        out[f"w{li}"] = w.astype(jnp.bfloat16)
        out[f"b{li}"] = b.astype(jnp.float32)
    return out


@functools.partial(jax.jit, static_argnames=("n_classes", "tile_n"))
def mlp_forward(x, params, *, n_classes, tile_n=None):
    """x: (N, D) float32 or bfloat16. params: output of prepare_params().
    Returns (N, n_classes) float32 logits."""
    N, D = x.shape
    w1, b1 = params["w1"], params["b1"]
    w2, b2 = params["w2"], params["b2"]
    w3, b3 = params["w3"], params["b3"]
    w4, b4 = params["w4"], params["b4"]
    H1, H2, H3, C_pad = w1.shape[1], w2.shape[1], w3.shape[1], w4.shape[1]

    vmem_cap = _physical_vmem_bytes()
    out_dtype = jnp.bfloat16

    # --- batch tile selection -------------------------------------------
    if tile_n is None:
        if N <= _SMALL_TILE_N:
            tile_n = _round_up(max(N, _BF16_SUBLANE), _BF16_SUBLANE)
        else:
            # 4096-row tiles on 128-MiB-VMEM chips (v5e/v6e), 2048 on v7x.
            default = 4096 if vmem_cap >= (96 << 20) else 2048
            # Guarantee >= 2 grid steps so both v7x TensorCores get work on
            # the "parallel" batch axis (also trims batch-padding waste).
            tile_n = min(default,
                         max(_SMALL_TILE_N,
                             _round_up(pl.cdiv(N, 2), _MXU_ROWS)))
    if tile_n % _BF16_SUBLANE != 0:
        raise ValueError(
            f"tile_n={tile_n} must be a multiple of {_BF16_SUBLANE} "
            "(bf16 sublane packing)")

    # --- per-step VMEM budget (generation-aware) -------------------------
    single_buffered = _single_buffered_invariants_supported()
    w_param_bytes = sum(int(params[k].size) * params[k].dtype.itemsize
                        for k in params)
    w_vmem_bytes = w_param_bytes if single_buffered else 2 * w_param_bytes
    x_bytes = 2 * tile_n * D * x.dtype.itemsize                       # dbl-buffered in
    out_bytes = 2 * tile_n * C_pad * jnp.dtype(out_dtype).itemsize    # dbl-buffered out
    # Live intermediates: f32 dot result + bf16 recast per hidden layer, f32 logits.
    act_bytes = tile_n * ((H1 + H2 + H3) * (4 + 2) + C_pad * 4)
    budget = x_bytes + out_bytes + w_vmem_bytes + act_bytes
    if budget > (vmem_cap * 3) // 4:
        raise ValueError(
            f"tile_n={tile_n}: estimated per-step VMEM {budget / 2**20:.1f} MiB "
            f"exceeds 75% of this chip's {vmem_cap / 2**20:.0f} MiB VMEM; "
            "use a smaller batch tile.")
    vmem_limit = int(min(vmem_cap - (8 << 20), max(2 * budget, 32 << 20)))

    # --- pad batch to a whole number of tiles ----------------------------
    n_pad = _round_up(N, tile_n)
    x_in = x if n_pad == N else jnp.pad(x, ((0, n_pad - N), (0, 0)))
    grid = (n_pad // tile_n,)

    # --- cost estimate (lets XLA schedule around the call) ---------------
    flops = 2 * n_pad * (D * H1 + H1 * H2 + H2 * H3 + H3 * C_pad)
    bytes_accessed = (n_pad * D * x.dtype.itemsize
                      + n_pad * C_pad * jnp.dtype(out_dtype).itemsize
                      + w_param_bytes)
    cost = pl.CostEstimate(flops=flops, transcendentals=0,
                           bytes_accessed=bytes_accessed)

    out_padded = pl.pallas_call(
        mlp_kernel,
        out_shape=jax.ShapeDtypeStruct((n_pad, C_pad), out_dtype),
        grid_spec=pltpu.PrefetchScalarGridSpec(
            num_scalar_prefetch=0,
            grid=grid,
            in_specs=[
                pl.BlockSpec((tile_n, D), lambda i: (i, 0)),
                _invariant_spec(w1.shape), _invariant_spec(b1.shape),
                _invariant_spec(w2.shape), _invariant_spec(b2.shape),
                _invariant_spec(w3.shape), _invariant_spec(b3.shape),
                _invariant_spec(w4.shape), _invariant_spec(b4.shape),
            ],
            out_specs=pl.BlockSpec((tile_n, C_pad), lambda i: (i, 0)),
        ),
        compiler_params=pltpu.CompilerParams(
            dimension_semantics=("parallel",),
            vmem_limit_bytes=vmem_limit),
        cost_estimate=cost,
    )(x_in, w1, b1, w2, b2, w3, b3, w4, b4)

    # Strip batch padding + class-lane padding; return f32 like the module.
    return out_padded[:N, :n_classes].astype(jnp.float32)


def init_mlp_params(key, input_size, n_classes):
    """Deterministic f32 init mirroring nn.Linear (weights stored as (in, out))."""
    dims = [input_size, 512, 256, 128, n_classes]
    params = {}
    for li in range(4):
        fan_in, fan_out = dims[li], dims[li + 1]
        key, kw, kb = jax.random.split(key, 3)
        bound = 1.0 / jnp.sqrt(jnp.float32(fan_in))
        params[f"w{li + 1}"] = jax.random.uniform(
            kw, (fan_in, fan_out), jnp.float32, -bound, bound)
        params[f"b{li + 1}"] = jax.random.uniform(
            kb, (1, fan_out), jnp.float32, -bound, bound)
    return params


def mlp_reference(x, params):
    """Plain-JAX f32 reference of the PyTorch forward pass."""
    h = jax.nn.relu(x @ params["w1"] + params["b1"])
    h = jax.nn.relu(h @ params["w2"] + params["b2"])
    h = jax.nn.relu(h @ params["w3"] + params["b3"])
    return h @ params["w4"] + params["b4"]


if __name__ == "__main__":
    input_size = 64   # D of the flattened (N, D) input
    n_classes = 10

    key = jax.random.PRNGKey(0)
    key_x, key_x2, key_p = jax.random.split(key, 3)

    ref_params = init_mlp_params(key_p, input_size, n_classes)
    kernel_params = prepare_params(ref_params)

    # bf16 matmul inputs + bf16 logits writeback (f32 MXU accumulation)
    # => widened tolerance vs. the f32 reference.
    ATOL = RTOL = 5e-2

    # 1) Tiny smoke test (single grid step).
    x_small = jax.random.normal(key_x, (8, input_size), jnp.float32)
    out_small = jax.block_until_ready(
        mlp_forward(x_small, kernel_params, n_classes=n_classes))
    ref_small = mlp_reference(x_small, ref_params)
    assert out_small.shape == (8, n_classes)
    assert jnp.allclose(out_small, ref_small, atol=ATOL, rtol=RTOL), \
        float(jnp.max(jnp.abs(out_small - ref_small)))

    # 2) Multi-step grid (exercises batch tiling / >=2 "parallel" steps).
    x_big = jax.random.normal(key_x2, (512, input_size), jnp.float32)
    out_big = jax.block_until_ready(
        mlp_forward(x_big, kernel_params, n_classes=n_classes))
    ref_big = mlp_reference(x_big, ref_params)
    assert out_big.shape == (512, n_classes)
    assert jnp.allclose(out_big, ref_big, atol=ATOL, rtol=RTOL), \
        float(jnp.max(jnp.abs(out_big - ref_big)))

    print("KERNEL_OK")
</pallas_src>

<mosaic_0001>
module attributes {stable_mosaic.version = 11 : i64} {
  func.func @mlp_kernel(%arg0: i32, %arg1: memref<16x64xf32, #tpu.memory_space<vmem>>, %arg2: memref<64x512xbf16, #tpu.memory_space<vmem>>, %arg3: memref<1x512xf32, #tpu.memory_space<vmem>>, %arg4: memref<512x256xbf16, #tpu.memory_space<vmem>>, %arg5: memref<1x256xf32, #tpu.memory_space<vmem>>, %arg6: memref<256x128xbf16, #tpu.memory_space<vmem>>, %arg7: memref<1x128xf32, #tpu.memory_space<vmem>>, %arg8: memref<128x128xbf16, #tpu.memory_space<vmem>>, %arg9: memref<1x128xf32, #tpu.memory_space<vmem>>, %arg10: memref<16x128xbf16, #tpu.memory_space<vmem>>) attributes {dimension_semantics = [#tpu.dimension_semantics<parallel>], iteration_bounds = array<i64: 1>, scalar_prefetch = 0 : i64, scratch_operands = 0 : i64, tpu.core_type = #tpu.core_type<tc>, window_params = [{transform_indices = @transform_0, window_bounds = array<i64: 16, 64>}, {pipeline_mode = #tpu.pipeline_mode<synchronous>, transform_indices = @transform_1, window_bounds = array<i64: 64, 512>}, {pipeline_mode = #tpu.pipeline_mode<synchronous>, transform_indices = @transform_2, window_bounds = array<i64: 1, 512>}, {pipeline_mode = #tpu.pipeline_mode<synchronous>, transform_indices = @transform_3, window_bounds = array<i64: 512, 256>}, {pipeline_mode = #tpu.pipeline_mode<synchronous>, transform_indices = @transform_4, window_bounds = array<i64: 1, 256>}, {pipeline_mode = #tpu.pipeline_mode<synchronous>, transform_indices = @transform_5, window_bounds = array<i64: 256, 128>}, {pipeline_mode = #tpu.pipeline_mode<synchronous>, transform_indices = @transform_6, window_bounds = array<i64: 1, 128>}, {pipeline_mode = #tpu.pipeline_mode<synchronous>, transform_indices = @transform_7, window_bounds = array<i64: 128, 128>}, {pipeline_mode = #tpu.pipeline_mode<synchronous>, transform_indices = @transform_8, window_bounds = array<i64: 1, 128>}, {transform_indices = @transform_9, window_bounds = array<i64: 16, 128>}]} {
    %c0 = arith.constant 0 : index
    %c0_0 = arith.constant 0 : index
    %0 = vector.load %arg1[%c0, %c0_0] : memref<16x64xf32, #tpu.memory_space<vmem>>, vector<16x64xf32>
    %1 = arith.truncf %0 : vector<16x64xf32> to vector<16x64xbf16>
    %c0_1 = arith.constant 0 : index
    %c0_2 = arith.constant 0 : index
    %2 = vector.load %arg2[%c0_1, %c0_2] : memref<64x512xbf16, #tpu.memory_space<vmem>>, vector<64x512xbf16>
    %cst = arith.constant dense<0.000000e+00> : vector<16x512xf32>
    %3 = tpu.matmul %1, %2, %cst {dimension_numbers = #tpu.dot_dimension_numbers<[1], [0], [0], [1], [0, 0, 1, 1], [], []>} : vector<16x64xbf16>, vector<64x512xbf16>, vector<16x512xf32> -> vector<16x512xf32>
    %c0_3 = arith.constant 0 : index
    %c0_4 = arith.constant 0 : index
    %4 = vector.load %arg3[%c0_3, %c0_4] : memref<1x512xf32, #tpu.memory_space<vmem>>, vector<1x512xf32>
    %5 = vector.broadcast %4 : vector<1x512xf32> to vector<16x512xf32>
    %6 = arith.addf %3, %5 : vector<16x512xf32>
    %cst_5 = arith.constant 0.000000e+00 : f32
    %7 = vector.broadcast %cst_5 : f32 to vector<16x512xf32>
    %8 = arith.maximumf %6, %7 : vector<16x512xf32>
    %9 = arith.truncf %8 : vector<16x512xf32> to vector<16x512xbf16>
    %c0_6 = arith.constant 0 : index
    %c0_7 = arith.constant 0 : index
    %10 = vector.load %arg4[%c0_6, %c0_7] : memref<512x256xbf16, #tpu.memory_space<vmem>>, vector<512x256xbf16>
    %cst_8 = arith.constant dense<0.000000e+00> : vector<16x256xf32>
    %11 = tpu.matmul %9, %10, %cst_8 {dimension_numbers = #tpu.dot_dimension_numbers<[1], [0], [0], [1], [0, 0, 1, 1], [], []>} : vector<16x512xbf16>, vector<512x256xbf16>, vector<16x256xf32> -> vector<16x256xf32>
    %c0_9 = arith.constant 0 : index
    %c0_10 = arith.constant 0 : index
    %12 = vector.load %arg5[%c0_9, %c0_10] : memref<1x256xf32, #tpu.memory_space<vmem>>, vector<1x256xf32>
    %13 = vector.broadcast %12 : vector<1x256xf32> to vector<16x256xf32>
    %14 = arith.addf %11, %13 : vector<16x256xf32>
    %cst_11 = arith.constant 0.000000e+00 : f32
    %15 = vector.broadcast %cst_11 : f32 to vector<16x256xf32>
    %16 = arith.maximumf %14, %15 : vector<16x256xf32>
    %17 = arith.truncf %16 : vector<16x256xf32> to vector<16x256xbf16>
    %c0_12 = arith.constant 0 : index
    %c0_13 = arith.constant 0 : index
    %18 = vector.load %arg6[%c0_12, %c0_13] : memref<256x128xbf16, #tpu.memory_space<vmem>>, vector<256x128xbf16>
    %cst_14 = arith.constant dense<0.000000e+00> : vector<16x128xf32>
    %19 = tpu.matmul %17, %18, %cst_14 {dimension_numbers = #tpu.dot_dimension_numbers<[1], [0], [0], [1], [0, 0, 1, 1], [], []>} : vector<16x256xbf16>, vector<256x128xbf16>, vector<16x128xf32> -> vector<16x128xf32>
    %c0_15 = arith.constant 0 : index
    %c0_16 = arith.constant 0 : index
    %20 = vector.load %arg7[%c0_15, %c0_16] : memref<1x128xf32, #tpu.memory_space<vmem>>, vector<1x128xf32>
    %21 = vector.broadcast %20 : vector<1x128xf32> to vector<16x128xf32>
    %22 = arith.addf %19, %21 : vector<16x128xf32>
    %cst_17 = arith.constant 0.000000e+00 : f32
    %23 = vector.broadcast %cst_17 : f32 to vector<16x128xf32>
    %24 = arith.maximumf %22, %23 : vector<16x128xf32>
    %25 = arith.truncf %24 : vector<16x128xf32> to vector<16x128xbf16>
    %c0_18 = arith.constant 0 : index
    %c0_19 = arith.constant 0 : index
    %26 = vector.load %arg8[%c0_18, %c0_19] : memref<128x128xbf16, #tpu.memory_space<vmem>>, vector<128x128xbf16>
    %cst_20 = arith.constant dense<0.000000e+00> : vector<16x128xf32>
    %27 = tpu.matmul %25, %26, %cst_20 {dimension_numbers = #tpu.dot_dimension_numbers<[1], [0], [0], [1], [0, 0, 1, 1], [], []>} : vector<16x128xbf16>, vector<128x128xbf16>, vector<16x128xf32> -> vector<16x128xf32>
    %c0_21 = arith.constant 0 : index
    %c0_22 = arith.constant 0 : index
    %28 = vector.load %arg9[%c0_21, %c0_22] : memref<1x128xf32, #tpu.memory_space<vmem>>, vector<1x128xf32>
    %29 = vector.broadcast %28 : vector<1x128xf32> to vector<16x128xf32>
    %30 = arith.addf %27, %29 : vector<16x128xf32>
    %31 = arith.truncf %30 : vector<16x128xf32> to vector<16x128xbf16>
    %c0_23 = arith.constant 0 : index
    %c0_24 = arith.constant 0 : index
    %32 = vector.load %arg10[%c0_23, %c0_24] : memref<16x128xbf16, #tpu.memory_space<vmem>>, vector<16x128xbf16>
    tpu.vector_store %arg10[%c0_23, %c0_24], %31 {strides = array<i32>} : memref<16x128xbf16, #tpu.memory_space<vmem>>, vector<16x128xbf16>,
    return
  }
  func.func @transform_0(%arg0: i32) -> (i32, i32) {
    %c0_i32 = arith.constant 0 : i32
    %c0_i32_0 = arith.constant 0 : i32
    return %arg0, %c0_i32 : i32, i32
  }
  func.func @transform_1(%arg0: i32) -> (i32, i32) {
    %c0_i32 = arith.constant 0 : i32
    %c0_i32_0 = arith.constant 0 : i32
    %c0_i32_1 = arith.constant 0 : i32
    return %c0_i32, %c0_i32_0 : i32, i32
  }
  func.func @transform_2(%arg0: i32) -> (i32, i32) {
    %c0_i32 = arith.constant 0 : i32
    %c0_i32_0 = arith.constant 0 : i32
    %c0_i32_1 = arith.constant 0 : i32
    return %c0_i32, %c0_i32_0 : i32, i32
  }
  func.func @transform_3(%arg0: i32) -> (i32, i32) {
    %c0_i32 = arith.constant 0 : i32
    %c0_i32_0 = arith.constant 0 : i32
    %c0_i32_1 = arith.constant 0 : i32
    return %c0_i32, %c0_i32_0 : i32, i32
  }
  func.func @transform_4(%arg0: i32) -> (i32, i32) {
    %c0_i32 = arith.constant 0 : i32
    %c0_i32_0 = arith.constant 0 : i32
    %c0_i32_1 = arith.constant 0 : i32
    return %c0_i32, %c0_i32_0 : i32, i32
  }
  func.func @transform_5(%arg0: i32) -> (i32, i32) {
    %c0_i32 = arith.constant 0 : i32
    %c0_i32_0 = arith.constant 0 : i32
    %c0_i32_1 = arith.constant 0 : i32
    return %c0_i32, %c0_i32_0 : i32, i32
  }
  func.func @transform_6(%arg0: i32) -> (i32, i32) {
    %c0_i32 = arith.constant 0 : i32
    %c0_i32_0 = arith.constant 0 : i32
    %c0_i32_1 = arith.constant 0 : i32
    return %c0_i32, %c0_i32_0 : i32, i32
  }
  func.func @transform_7(%arg0: i32) -> (i32, i32) {
    %c0_i32 = arith.constant 0 : i32
    %c0_i32_0 = arith.constant 0 : i32
    %c0_i32_1 = arith.constant 0 : i32
    return %c0_i32, %c0_i32_0 : i32, i32
  }
  func.func @transform_8(%arg0: i32) -> (i32, i32) {
    %c0_i32 = arith.constant 0 : i32
    %c0_i32_0 = arith.constant 0 : i32
    %c0_i32_1 = arith.constant 0 : i32
    return %c0_i32, %c0_i32_0 : i32, i32
  }
  func.func @transform_9(%arg0: i32) -> (i32, i32) {
    %c0_i32 = arith.constant 0 : i32
    %c0_i32_0 = arith.constant 0 : i32
    return %arg0, %c0_i32 : i32, i32
  }
}

</mosaic_0001>

<llo_original>
// kernel: mlp_forward.1
$region0: #{mlp_forward.1}
  #allocation0 [shape = 'u32[]', space=smem, size = 0x4, offset = 0x4, fixed_abs, tag = 'smem constant byte address 0x4 - core index']
  #allocation1 [shape = 'u32[72,128]{1,0:T(1,128)}', space=vmem, size = 0x9000, scoped, tag = 'internal scratch']
  %s0 = inlined_call_operand.vmem [shape: f32[16,64], index: 0, kind: input, shape index: {}]
  %s1 = inlined_call_operand.hbm [shape: bf16[64,512], index: 1, kind: input, shape index: {}]
  %s2 = inlined_call_operand.vmem [shape: f32[1,512], index: 2, kind: input, shape index: {}]
  %s3 = inlined_call_operand.hbm [shape: bf16[512,256], index: 3, kind: input, shape index: {}]
  %s4 = inlined_call_operand.vmem [shape: f32[1,256], index: 4, kind: input, shape index: {}]
  %s5 = inlined_call_operand.hbm [shape: bf16[256,128], index: 5, kind: input, shape index: {}]
  %s6 = inlined_call_operand.vmem [shape: f32[1,128], index: 6, kind: input, shape index: {}]
  %s7 = inlined_call_operand.hbm [shape: bf16[128,128], index: 7, kind: input, shape index: {}]
  %s8 = inlined_call_operand.vmem [shape: f32[1,128], index: 8, kind: input, shape index: {}]
  %s9 = inlined_call_operand.vmem [shape: bf16[16,128], index: 9, kind: output, shape index: {}]
  %s10 = sld [smem:[#allocation0]]
  $region62: #{mlp_forward.1} parent=0
    _
  %s12 = ssub.s32 1, %s10
  %s13 = scalar_select 0, %s12, %s10
  $region1: #{mlp_forward.1} parent=0
    #allocation2 [shape = 'u8[65536]{0}', space=vmem, size = 0x10000, scoped, tag = 'input window, operand 1, single buffered']
    #allocation3 [shape = 's32[1]{0}', space=sflag, size = 0x4, scoped, tag = 'scoped memory for mlp_forward.1']
    #allocation4 [shape = 'u8[262144]{0}', space=vmem, size = 0x40000, scoped, tag = 'input window, operand 3, single buffered']
    #allocation5 [shape = 's32[1]{0}', space=sflag, size = 0x4, scoped, tag = 'scoped memory for mlp_forward.1']
    #allocation6 [shape = 'u8[65536]{0}', space=vmem, size = 0x10000, scoped, tag = 'input window, operand 5, single buffered']
    #allocation7 [shape = 'u8[32768]{0}', space=vmem, size = 0x8000, scoped, tag = 'input window, operand 7, single buffered']
    #allocation8 [shape = 's32[1]{0}', space=sflag, size = 0x4, scoped, tag = 'scoped memory for mlp_forward.1']
    %14 = vsyncpa [#allocation3], 0
    %15 = vsyncpa [#allocation5], 0
    %16 = vsyncpa [#allocation8], 0
    // Predicated region
    $region2: #{mlp_forward.1} parent=1 // pred_check
      _
    $region3: #{mlp_forward.1} parent=1 // pred_check_branch
      %18 = sbr.rel (0) target = $region5
    $region4: #{mlp_forward.1} parent=1 // pred_region
      _
    $region5: #{mlp_forward.1} parent=1 // pred_fallthru
      _
    // Predicated region
    $region6: #{mlp_forward.1} parent=1 // pred_check
      _
    $region7: #{mlp_forward.1} parent=1 // pred_check_branch
      %20 = sbr.rel (0) target = $region9
    $region8: #{mlp_forward.1} parent=1 // pred_region
      %22 = vsyncadd [#allocation3], 0
      %s23 = sshll.u32 %s1, 4
      %s24 = int_to_ptr.hbm [resolvable:$true] %s23
      %s25 = sshll.u32 [#allocation2], 4
      %s26 = int_to_ptr.vmem [resolvable:$true] %s25
      %31 = dma.hbm_to_vmem [thread:$0]  %s24, 2048, %s26, [#allocation3], 256, 256, 16
    $region9: #{mlp_forward.1} parent=1 // pred_fallthru
      _
    // Predicated region
    $region10: #{mlp_forward.1} parent=1 // pred_check
      _
    $region11: #{mlp_forward.1} parent=1 // pred_check_branch
      %33 = sbr.rel (0) target = $region13
    $region12: #{mlp_forward.1} parent=1 // pred_region
      _
    $region13: #{mlp_forward.1} parent=1 // pred_fallthru
      _
    // Predicated region
    $region14: #{mlp_forward.1} parent=1 // pred_check
      _
    $region15: #{mlp_forward.1} parent=1 // pred_check_branch
      %35 = sbr.rel (0) target = $region17
    $region16: #{mlp_forward.1} parent=1 // pred_region
      %37 = vsyncadd [#allocation5], 0
      %s38 = sshll.u32 %s3, 4
      %s39 = int_to_ptr.hbm [resolvable:$true] %s38
      %s40 = sshll.u32 [#allocation4], 4
      %s41 = int_to_ptr.vmem [resolvable:$true] %s40
      %46 = dma.hbm_to_vmem [thread:$0]  %s39, 8192, %s41, [#allocation5], 128, 128, 8
    $region17: #{mlp_forward.1} parent=1 // pred_fallthru
      _
    // Predicated region
    $region18: #{mlp_forward.1} parent=1 // pred_check
      _
    $region19: #{mlp_forward.1} parent=1 // pred_check_branch
      %48 = sbr.rel (0) target = $region21
    $region20: #{mlp_forward.1} parent=1 // pred_region
      _
    $region21: #{mlp_forward.1} parent=1 // pred_fallthru
      _
    // Predicated region
    $region22: #{mlp_forward.1} parent=1 // pred_check
      _
    $region23: #{mlp_forward.1} parent=1 // pred_check_branch
      %50 = sbr.rel (0) target = $region25
    $region24: #{mlp_forward.1} parent=1 // pred_region
      %52 = vsyncadd [#allocation5], 0
      %s53 = sshll.u32 %s5, 4
      %s54 = int_to_ptr.hbm [resolvable:$true] %s53
      %s55 = sshll.u32 [#allocation6], 4
      %s56 = int_to_ptr.vmem [resolvable:$true] %s55
      %61 = dma.hbm_to_vmem [thread:$0]  %s54, 2048, %s56, [#allocation5], 64, 64, 4
    $region25: #{mlp_forward.1} parent=1 // pred_fallthru
      _
    // Predicated region
    $region26: #{mlp_forward.1} parent=1 // pred_check
      _
    $region27: #{mlp_forward.1} parent=1 // pred_check_branch
      %63 = sbr.rel (0) target = $region29
    $region28: #{mlp_forward.1} parent=1 // pred_region
      _
    $region29: #{mlp_forward.1} parent=1 // pred_fallthru
      _
    // Predicated region
    $region30: #{mlp_forward.1} parent=1 // pred_check
      _
    $region31: #{mlp_forward.1} parent=1 // pred_check_branch
      %65 = sbr.rel (0) target = $region33
    $region32: #{mlp_forward.1} parent=1 // pred_region
      %67 = vsyncadd [#allocation8], 0
      %s68 = sshll.u32 %s7, 4
      %s69 = int_to_ptr.hbm [resolvable:$true] %s68
      %s70 = sshll.u32 [#allocation7], 4
      %s71 = int_to_ptr.vmem [resolvable:$true] %s70
      %76 = dma.hbm_to_vmem [thread:$0]  %s69, 1024, %s71, [#allocation8], 64, 64, 4
    $region33: #{mlp_forward.1} parent=1 // pred_fallthru
      _
    // Predicated region
    $region34: #{mlp_forward.1} parent=1 // pred_check
      _
    $region35: #{mlp_forward.1} parent=1 // pred_check_branch
      %78 = sbr.rel (0) target = $region37
    $region36: #{mlp_forward.1} parent=1 // pred_region
      _
    $region37: #{mlp_forward.1} parent=1 // pred_fallthru
      _
    // Predicated region
    $region38: #{mlp_forward.1} parent=1 // pred_check
      _
    $region39: #{mlp_forward.1} parent=1 // pred_check_branch
      %80 = sbr.rel (0) target = $region41
    $region40: #{mlp_forward.1} parent=1 // pred_region
      %82 = dma.done [#allocation3], 2048
    $region41: #{mlp_forward.1} parent=1 // pred_fallthru
      _
    // Predicated region
    $region42: #{mlp_forward.1} parent=1 // pred_check
      _
    $region43: #{mlp_forward.1} parent=1 // pred_check_branch
      %84 = sbr.rel (0) target = $region45
    $region44: #{mlp_forward.1} parent=1 // pred_region
      %86 = dma.done [#allocation5], 8192
    $region45: #{mlp_forward.1} parent=1 // pred_fallthru
      _
    // Predicated region
    $region46: #{mlp_forward.1} parent=1 // pred_check
      _
    $region47: #{mlp_forward.1} parent=1 // pred_check_branch
      %88 = sbr.rel (0) target = $region49
    $region48: #{mlp_forward.1} parent=1 // pred_region
      %90 = dma.done [#allocation5], 2048
    $region49: #{mlp_forward.1} parent=1 // pred_fallthru
      _
    // Predicated region
    $region50: #{mlp_forward.1} parent=1 // pred_check
      _
    $region51: #{mlp_forward.1} parent=1 // pred_check_branch
      %92 = sbr.rel (0) target = $region53
    $region52: #{mlp_forward.1} parent=1 // pred_region
      %94 = dma.done [#allocation8], 1024
    $region53: #{mlp_forward.1} parent=1 // pred_fallthru
      _
    %v96 = vld [vmem:[%s0] sm:$0xff]
    %v97 = vld [vmem:[%s0 + $0x8] sm:$0xff]
    %v98 = vpack.c.bf16 %v97, %v96
    %v99 = vld [vmem:[#allocation2] sm:$0xff]
    %v100 = vld [vmem:[#allocation2 + $0x8] sm:$0xff]
    %v101 = vld [vmem:[#allocation2 + $0x10] sm:$0xff]
    %v102 = vld [vmem:[#allocation2 + $0x18] sm:$0xff]
    %v103 = vld [vmem:[#allocation2 + $0x20] sm:$0xff]
    %v104 = vld [vmem:[#allocation2 + $0x28] sm:$0xff]
    %v105 = vld [vmem:[#allocation2 + $0x30] sm:$0xff]
    %v106 = vld [vmem:[#allocation2 + $0x38] sm:$0xff]
    %v107 = vld [vmem:[#allocation2 + $0x40] sm:$0xff]
    %v108 = vld [vmem:[#allocation2 + $0x48] sm:$0xff]
    %v109 = vld [vmem:[#allocation2 + $0x50] sm:$0xff]
    %v110 = vld [vmem:[#allocation2 + $0x58] sm:$0xff]
    %v111 = vld [vmem:[#allocation2 + $0x60] sm:$0xff]
    %v112 = vld [vmem:[#allocation2 + $0x68] sm:$0xff]
    %v113 = vld [vmem:[#allocation2 + $0x70] sm:$0xff]
    %v114 = vld [vmem:[#allocation2 + $0x78] sm:$0xff]
    %v115 = vld [vmem:[%s2] sm:$0xf]
    %v117 = vperm.slane %v115, 0
    %v118 = vperm.slane %v115, 1
    %v119 = vperm.slane %v115, 2
    %v120 = vperm.slane %v115, 3
    %v141 = vunpack.c.l.b16 %v99
    %v142 = vunpack.c.h.b16 %v99
    %v143 = vunpack.c.l.b16 %v100
    %v144 = vunpack.c.h.b16 %v100
    %v145 = vunpack.c.l.b16 %v101
    %v146 = vunpack.c.h.b16 %v101
    %v147 = vunpack.c.l.b16 %v102
    %v148 = vunpack.c.h.b16 %v102
    %v149 = vunpack.c.l.b16 %v103
    %v150 = vunpack.c.h.b16 %v103
    %v151 = vunpack.c.l.b16 %v104
    %v152 = vunpack.c.h.b16 %v104
    %v153 = vunpack.c.l.b16 %v105
    %v154 = vunpack.c.h.b16 %v105
    %v155 = vunpack.c.l.b16 %v106
    %v156 = vunpack.c.h.b16 %v106
    %v157 = vunpack.c.l.b16 %v107
    %v158 = vunpack.c.h.b16 %v107
    %v159 = vunpack.c.l.b16 %v108
    %v160 = vunpack.c.h.b16 %v108
    %v161 = vunpack.c.l.b16 %v109
    %v162 = vunpack.c.h.b16 %v109
    %v163 = vunpack.c.l.b16 %v110
    %v164 = vunpack.c.h.b16 %v110
    %v165 = vunpack.c.l.b16 %v111
    %v166 = vunpack.c.h.b16 %v111
    %v167 = vunpack.c.l.b16 %v112
    %v168 = vunpack.c.h.b16 %v112
    %v169 = vunpack.c.l.b16 %v113
    %v170 = vunpack.c.h.b16 %v113
    %v171 = vunpack.c.l.b16 %v114
    %v172 = vunpack.c.h.b16 %v114
    %v173 = vpack.c.b16 %v145, %v141
    %v174 = vpack.c.b16 %v146, %v142
    %v175 = vpack.c.b16 %v147, %v143
    %v176 = vpack.c.b16 %v148, %v144
    %v177 = vpack.c.b16 %v153, %v149
    %v178 = vpack.c.b16 %v154, %v150
    %v179 = vpack.c.b16 %v155, %v151
    %v180 = vpack.c.b16 %v156, %v152
    %v181 = vpack.c.b16 %v161, %v157
    %v182 = vpack.c.b16 %v162, %v158
    %v183 = vpack.c.b16 %v163, %v159
    %v184 = vpack.c.b16 %v164, %v160
    %v185 = vpack.c.b16 %v169, %v165
    %v186 = vpack.c.b16 %v170, %v166
    %v187 = vpack.c.b16 %v171, %v167
    %v188 = vpack.c.b16 %v172, %v168
    %vm205 = vcmask 523264
    %v207 = vsel %vm205, %v98, 0
    %209 = vmatpush.bf16.msra.mxu0 0
    %210 = vmatpush.bf16.msra.mxu0 0
    %211 = vmatpush.bf16.msra.mxu0 0
    %212 = vmatpush.bf16.msra.mxu0 0
    %213 = vmatpush.bf16.msra.mxu0 %v185
    %214 = vmatpush.bf16.msra.mxu0 %v181
    %215 = vmatpush.bf16.msra.mxu0 %v177
    %216 = vmatpush.bf16.msra.mxu0 %v173
    %217 = vmatmul.bf16.gmra.mxu0 %v207
    %v218 = vpop.f32.mrf.mxu0
    %v219 = vadd.f32 %v117, %v218
    %v220 = vpop.f32.mrf.mxu0
    %v221 = vadd.f32 %v117, %v220
    %222 = vdwg.mxu0
    %223 = vmatpush.bf16.msra.mxu0 0
    %224 = vmatpush.bf16.msra.mxu0 0
    %225 = vmatpush.bf16.msra.mxu0 0
    %226 = vmatpush.bf16.msra.mxu0 0
    %227 = vmatpush.bf16.msra.mxu0 %v186
    %228 = vmatpush.bf16.msra.mxu0 %v182
    %229 = vmatpush.bf16.msra.mxu0 %v178
    %230 = vmatpush.bf16.msra.mxu0 %v174
    %231 = vmatmul.bf16.gmra.mxu0 %v207
    %v232 = vpop.f32.mrf.mxu0
    %v233 = vadd.f32 %v118, %v232
    %v234 = vpop.f32.mrf.mxu0
    %v235 = vadd.f32 %v118, %v234
    %236 = vdwg.mxu0
    %237 = vmatpush.bf16.msra.mxu0 0
    %238 = vmatpush.bf16.msra.mxu0 0
    %239 = vmatpush.bf16.msra.mxu0 0
    %240 = vmatpush.bf16.msra.mxu0 0
    %241 = vmatpush.bf16.msra.mxu0 %v187
    %242 = vmatpush.bf16.msra.mxu0 %v183
    %243 = vmatpush.bf16.msra.mxu0 %v179
    %244 = vmatpush.bf16.msra.mxu0 %v175
    %245 = vmatmul.bf16.gmra.mxu0 %v207
    %v246 = vpop.f32.mrf.mxu0
    %v247 = vadd.f32 %v119, %v246
    %v248 = vpop.f32.mrf.mxu0
    %v249 = vadd.f32 %v119, %v248
    %250 = vdwg.mxu0
    %251 = vmatpush.bf16.msra.mxu0 0
    %252 = vmatpush.bf16.msra.mxu0 0
    %253 = vmatpush.bf16.msra.mxu0 0
    %254 = vmatpush.bf16.msra.mxu0 0
    %255 = vmatpush.bf16.msra.mxu0 %v188
    %256 = vmatpush.bf16.msra.mxu0 %v184
    %257 = vmatpush.bf16.msra.mxu0 %v180
    %258 = vmatpush.bf16.msra.mxu0 %v176
    %259 = vmatmul.bf16.gmra.mxu0 %v207
    %v260 = vpop.f32.mrf.mxu0
    %v261 = vadd.f32 %v120, %v260
    %v262 = vpop.f32.mrf.mxu0
    %v263 = vadd.f32 %v120, %v262
    %264 = vdwg.mxu0
    %v265 = vmax.f32 %v219, 0.0
    %v266 = vmax.f32 %v233, 0.0
    %v267 = vmax.f32 %v247, 0.0
    %v268 = vmax.f32 %v261, 0.0
    %v269 = vmax.f32 %v221, 0.0
    %v270 = vmax.f32 %v235, 0.0
    %v271 = vmax.f32 %v249, 0.0
    %v272 = vmax.f32 %v263, 0.0
    %v273 = vpack.c.bf16 %v269, %v265
    %v274 = vpack.c.bf16 %v270, %v266
    %v275 = vpack.c.bf16 %v271, %v267
    %v276 = vpack.c.bf16 %v272, %v268
    %v277 = vld [vmem:[#allocation4] sm:$0xff]
    %v278 = vld [vmem:[#allocation4 + $0x8] sm:$0xff]
    %v279 = vld [vmem:[#allocation4 + $0x10] sm:$0xff]
    %v280 = vld [vmem:[#allocation4 + $0x18] sm:$0xff]
    %v281 = vld [vmem:[#allocation4 + $0x20] sm:$0xff]
    %v282 = vld [vmem:[#allocation4 + $0x28] sm:$0xff]
    %v283 = vld [vmem:[#allocation4 + $0x30] sm:$0xff]
    %v284 = vld [vmem:[#allocation4 + $0x38] sm:$0xff]
    %v285 = vld [vmem:[#allocation4 + $0x40] sm:$0xff]
    %v286 = vld [vmem:[#allocation4 + $0x48] sm:$0xff]
    %v287 = vld [vmem:[#allocation4 + $0x50] sm:$0xff]
    %v288 = vld [vmem:[#allocation4 + $0x58] sm:$0xff]
    %v289 = vld [vmem:[#allocation4 + $0x60] sm:$0xff]
    %v290 = vld [vmem:[#allocation4 + $0x68] sm:$0xff]
    %v291 = vld [vmem:[#allocation4 + $0x70] sm:$0xff]
    %v292 = vld [vmem:[#allocation4 + $0x78] sm:$0xff]
    %v293 = vld [vmem:[#allocation4 + $0x80] sm:$0xff]
    %v294 = vld [vmem:[#allocation4 + $0x88] sm:$0xff]
    %v295 = vld [vmem:[#allocation4 + $0x90] sm:$0xff]
    %v296 = vld [vmem:[#allocation4 + $0x98] sm:$0xff]
    %v297 = vld [vmem:[#allocation4 + $0xa0] sm:$0xff]
    %v298 = vld [vmem:[#allocation4 + $0xa8] sm:$0xff]
    %v299 = vld [vmem:[#allocation4 + $0xb0] sm:$0xff]
    %v300 = vld [vmem:[#allocation4 + $0xb8] sm:$0xff]
    %v301 = vld [vmem:[#allocation4 + $0xc0] sm:$0xff]
    %v302 = vld [vmem:[#allocation4 + $0xc8] sm:$0xff]
    %v303 = vld [vmem:[#allocation4 + $0xd0] sm:$0xff]
    %v304 = vld [vmem:[#allocation4 + $0xd8] sm:$0xff]
    %v305 = vld [vmem:[#allocation4 + $0xe0] sm:$0xff]
    %v306 = vld [vmem:[#allocation4 + $0xe8] sm:$0xff]
    %v307 = vld [vmem:[#allocation4 + $0xf0] sm:$0xff]
    %v308 = vld [vmem:[#allocation4 + $0xf8] sm:$0xff]
    %v309 = vld [vmem:[#allocation4 + $0x100] sm:$0xff]
    %v310 = vld [vmem:[#allocation4 + $0x108] sm:$0xff]
    %v311 = vld [vmem:[#allocation4 + $0x110] sm:$0xff]
    %v312 = vld [vmem:[#allocation4 + $0x118] sm:$0xff]
    %v313 = vld [vmem:[#allocation4 + $0x120] sm:$0xff]
    %v314 = vld [vmem:[#allocation4 + $0x128] sm:$0xff]
    %v315 = vld [vmem:[#allocation4 + $0x130] sm:$0xff]
    %v316 = vld [vmem:[#allocation4 + $0x138] sm:$0xff]
    %v317 = vld [vmem:[#allocation4 + $0x140] sm:$0xff]
    %v318 = vld [vmem:[#allocation4 + $0x148] sm:$0xff]
    %v319 = vld [vmem:[#allocation4 + $0x150] sm:$0xff]
    %v320 = vld [vmem:[#allocation4 + $0x158] sm:$0xff]
    %v321 = vld [vmem:[#allocation4 + $0x160] sm:$0xff]
    %v322 = vld [vmem:[#allocation4 + $0x168] sm:$0xff]
    %v323 = vld [vmem:[#allocation4 + $0x170] sm:$0xff]
    %v324 = vld [vmem:[#allocation4 + $0x178] sm:$0xff]
    %v325 = vld [vmem:[#allocation4 + $0x180] sm:$0xff]
    %v326 = vld [vmem:[#allocation4 + $0x188] sm:$0xff]
    %v327 = vld [vmem:[#allocation4 + $0x190] sm:$0xff]
    %v328 = vld [vmem:[#allocation4 + $0x198] sm:$0xff]
    %v329 = vld [vmem:[#allocation4 + $0x1a0] sm:$0xff]
    %v330 = vld [vmem:[#allocation4 + $0x1a8] sm:$0xff]
    %v331 = vld [vmem:[#allocation4 + $0x1b0] sm:$0xff]
    %v332 = vld [vmem:[#allocation4 + $0x1b8] sm:$0xff]
    %v333 = vld [vmem:[#allocation4 + $0x1c0] sm:$0xff]
    %v334 = vld [vmem:[#allocation4 + $0x1c8] sm:$0xff]
    %v335 = vld [vmem:[#allocation4 + $0x1d0] sm:$0xff]
    %v336 = vld [vmem:[#allocation4 + $0x1d8] sm:$0xff]
    %v337 = vld [vmem:[#allocation4 + $0x1e0] sm:$0xff]
    %v338 = vld [vmem:[#allocation4 + $0x1e8] sm:$0xff]
    %v339 = vld [vmem:[#allocation4 + $0x1f0] sm:$0xff]
    %v340 = vld [vmem:[#allocation4 + $0x1f8] sm:$0xff]
    %v341 = vld [vmem:[%s4] sm:$0x3]
    %v343 = vperm.slane %v341, 0
    %v344 = vperm.slane %v341, 1
    %v411 = vunpack.c.l.b16 %v277
    %v412 = vunpack.c.h.b16 %v277
    %v413 = vunpack.c.l.b16 %v278
    %v414 = vunpack.c.h.b16 %v278
    %v415 = vunpack.c.l.b16 %v279
    %v416 = vunpack.c.h.b16 %v279
    %v417 = vunpack.c.l.b16 %v280
    %v418 = vunpack.c.h.b16 %v280
    %v419 = vunpack.c.l.b16 %v281
    %v420 = vunpack.c.h.b16 %v281
    %v421 = vunpack.c.l.b16 %v282
    %v422 = vunpack.c.h.b16 %v282
    %v423 = vunpack.c.l.b16 %v283
    %v424 = vunpack.c.h.b16 %v283
    %v425 = vunpack.c.l.b16 %v284
    %v426 = vunpack.c.h.b16 %v284
    %v427 = vunpack.c.l.b16 %v285
    %v428 = vunpack.c.h.b16 %v285
    %v429 = vunpack.c.l.b16 %v286
    %v430 = vunpack.c.h.b16 %v286
    %v431 = vunpack.c.l.b16 %v287
    %v432 = vunpack.c.h.b16 %v287
    %v433 = vunpack.c.l.b16 %v288
    %v434 = vunpack.c.h.b16 %v288
    %v435 = vunpack.c.l.b16 %v289
    %v436 = vunpack.c.h.b16 %v289
    %v437 = vunpack.c.l.b16 %v290
    %v438 = vunpack.c.h.b16 %v290
    %v439 = vunpack.c.l.b16 %v291
    %v440 = vunpack.c.h.b16 %v291
    %v441 = vunpack.c.l.b16 %v292
    %v442 = vunpack.c.h.b16 %v292
    %v443 = vunpack.c.l.b16 %v293
    %v444 = vunpack.c.h.b16 %v293
    %v445 = vunpack.c.l.b16 %v294
    %v446 = vunpack.c.h.b16 %v294
    %v447 = vunpack.c.l.b16 %v295
    %v448 = vunpack.c.h.b16 %v295
    %v449 = vunpack.c.l.b16 %v296
    %v450 = vunpack.c.h.b16 %v296
    %v451 = vunpack.c.l.b16 %v297
    %v452 = vunpack.c.h.b16 %v297
    %v453 = vunpack.c.l.b16 %v298
    %v454 = vunpack.c.h.b16 %v298
    %v455 = vunpack.c.l.b16 %v299
    %v456 = vunpack.c.h.b16 %v299
    %v457 = vunpack.c.l.b16 %v300
    %v458 = vunpack.c.h.b16 %v300
    %v459 = vunpack.c.l.b16 %v301
    %v460 = vunpack.c.h.b16 %v301
    %v461 = vunpack.c.l.b16 %v302
    %v462 = vunpack.c.h.b16 %v302
    %v463 = vunpack.c.l.b16 %v303
    %v464 = vunpack.c.h.b16 %v303
    %v465 = vunpack.c.l.b16 %v304
    %v466 = vunpack.c.h.b16 %v304
    %v467 = vunpack.c.l.b16 %v305
    %v468 = vunpack.c.h.b16 %v305
    %v469 = vunpack.c.l.b16 %v306
    %v470 = vunpack.c.h.b16 %v306
    %v471 = vunpack.c.l.b16 %v307
    %v472 = vunpack.c.h.b16 %v307
    %v473 = vunpack.c.l.b16 %v308
    %v474 = vunpack.c.h.b16 %v308
    %v475 = vunpack.c.l.b16 %v309
    %v476 = vunpack.c.h.b16 %v309
    %v477 = vunpack.c.l.b16 %v310
    %v478 = vunpack.c.h.b16 %v310
    %v479 = vunpack.c.l.b16 %v311
    %v480 = vunpack.c.h.b16 %v311
    %v481 = vunpack.c.l.b16 %v312
    %v482 = vunpack.c.h.b16 %v312
    %v483 = vunpack.c.l.b16 %v313
    %v484 = vunpack.c.h.b16 %v313
    %v485 = vunpack.c.l.b16 %v314
    %v486 = vunpack.c.h.b16 %v314
    %v487 = vunpack.c.l.b16 %v315
    %v488 = vunpack.c.h.b16 %v315
    %v489 = vunpack.c.l.b16 %v316
    %v490 = vunpack.c.h.b16 %v316
    %v491 = vunpack.c.l.b16 %v317
    %v492 = vunpack.c.h.b16 %v317
    %v493 = vunpack.c.l.b16 %v318
    %v494 = vunpack.c.h.b16 %v318
    %v495 = vunpack.c.l.b16 %v319
    %v496 = vunpack.c.h.b16 %v319
    %v497 = vunpack.c.l.b16 %v320
    %v498 = vunpack.c.h.b16 %v320
    %v499 = vunpack.c.l.b16 %v321
    %v500 = vunpack.c.h.b16 %v321
    %v501 = vunpack.c.l.b16 %v322
    %v502 = vunpack.c.h.b16 %v322
    %v503 = vunpack.c.l.b16 %v323
    %v504 = vunpack.c.h.b16 %v323
    %v505 = vunpack.c.l.b16 %v324
    %v506 = vunpack.c.h.b16 %v324
    %v507 = vunpack.c.l.b16 %v325
    %v508 = vunpack.c.h.b16 %v325
    %v509 = vunpack.c.l.b16 %v326
    %v510 = vunpack.c.h.b16 %v326
    %v511 = vunpack.c.l.b16 %v327
    %v512 = vunpack.c.h.b16 %v327
    %v513 = vunpack.c.l.b16 %v328
    %v514 = vunpack.c.h.b16 %v328
    %v515 = vunpack.c.l.b16 %v329
    %v516 = vunpack.c.h.b16 %v329
    %v517 = vunpack.c.l.b16 %v330
    %v518 = vunpack.c.h.b16 %v330
    %v519 = vunpack.c.l.b16 %v331
    %v520 = vunpack.c.h.b16 %v331
    %v521 = vunpack.c.l.b16 %v332
    %v522 = vunpack.c.h.b16 %v332
    %v523 = vunpack.c.l.b16 %v333
    %v524 = vunpack.c.h.b16 %v333
    %v525 = vunpack.c.l.b16 %v334
    %v526 = vunpack.c.h.b16 %v334
    %v527 = vunpack.c.l.b16 %v335
    %v528 = vunpack.c.h.b16 %v335
    %v529 = vunpack.c.l.b16 %v336
    %v530 = vunpack.c.h.b16 %v336
    %v531 = vunpack.c.l.b16 %v337
    %v532 = vunpack.c.h.b16 %v337
    %v533 = vunpack.c.l.b16 %v338
    %v534 = vunpack.c.h.b16 %v338
    %v535 = vunpack.c.l.b16 %v339
    %v536 = vunpack.c.h.b16 %v339
    %v537 = vunpack.c.l.b16 %v340
    %v538 = vunpack.c.h.b16 %v340
    %v539 = vpack.c.b16 %v413, %v411
    %v540 = vpack.c.b16 %v414, %v412
    %v541 = vpack.c.b16 %v417, %v415
    %v542 = vpack.c.b16 %v418, %v416
    %v543 = vpack.c.b16 %v421, %v419
    %v544 = vpack.c.b16 %v422, %v420
    %v545 = vpack.c.b16 %v425, %v423
    %v546 = vpack.c.b16 %v426, %v424
    %v547 = vpack.c.b16 %v429, %v427
    %v548 = vpack.c.b16 %v430, %v428
    %v549 = vpack.c.b16 %v433, %v431
    %v550 = vpack.c.b16 %v434, %v432
    %v551 = vpack.c.b16 %v437, %v435
    %v552 = vpack.c.b16 %v438, %v436
    %v553 = vpack.c.b16 %v441, %v439
    %v554 = vpack.c.b16 %v442, %v440
    %v555 = vpack.c.b16 %v445, %v443
    %v556 = vpack.c.b16 %v446, %v444
    %v557 = vpack.c.b16 %v449, %v447
    %v558 = vpack.c.b16 %v450, %v448
    %v559 = vpack.c.b16 %v453, %v451
    %v560 = vpack.c.b16 %v454, %v452
    %v561 = vpack.c.b16 %v457, %v455
    %v562 = vpack.c.b16 %v458, %v456
    %v563 = vpack.c.b16 %v461, %v459
    %v564 = vpack.c.b16 %v462, %v460
    %v565 = vpack.c.b16 %v465, %v463
    %v566 = vpack.c.b16 %v466, %v464
    %v567 = vpack.c.b16 %v469, %v467
    %v568 = vpack.c.b16 %v470, %v468
    %v569 = vpack.c.b16 %v473, %v471
    %v570 = vpack.c.b16 %v474, %v472
    %v571 = vpack.c.b16 %v477, %v475
    %v572 = vpack.c.b16 %v478, %v476
    %v573 = vpack.c.b16 %v481, %v479
    %v574 = vpack.c.b16 %v482, %v480
    %v575 = vpack.c.b16 %v485, %v483
    %v576 = vpack.c.b16 %v486, %v484
    %v577 = vpack.c.b16 %v489, %v487
    %v578 = vpack.c.b16 %v490, %v488
    %v579 = vpack.c.b16 %v493, %v491
    %v580 = vpack.c.b16 %v494, %v492
    %v581 = vpack.c.b16 %v497, %v495
    %v582 = vpack.c.b16 %v498, %v496
    %v583 = vpack.c.b16 %v501, %v499
    %v584 = vpack.c.b16 %v502, %v500
    %v585 = vpack.c.b16 %v505, %v503
    %v586 = vpack.c.b16 %v506, %v504
    %v587 = vpack.c.b16 %v509, %v507
    %v588 = vpack.c.b16 %v510, %v508
    %v589 = vpack.c.b16 %v513, %v511
    %v590 = vpack.c.b16 %v514, %v512
    %v591 = vpack.c.b16 %v517, %v515
    %v592 = vpack.c.b16 %v518, %v516
    %v593 = vpack.c.b16 %v521, %v519
    %v594 = vpack.c.b16 %v522, %v520
    %v595 = vpack.c.b16 %v525, %v523
    %v596 = vpack.c.b16 %v526, %v524
    %v597 = vpack.c.b16 %v529, %v527
    %v598 = vpack.c.b16 %v530, %v528
    %v599 = vpack.c.b16 %v533, %v531
    %v600 = vpack.c.b16 %v534, %v532
    %v601 = vpack.c.b16 %v537, %v535
    %v602 = vpack.c.b16 %v538, %v536
    %667 = vmatpush.bf16.msra.mxu0 %v553
    %668 = vmatpush.bf16.msra.mxu0 %v551
    %669 = vmatpush.bf16.msra.mxu0 %v549
    %670 = vmatpush.bf16.msra.mxu0 %v547
    %671 = vmatpush.bf16.msra.mxu0 %v545
    %672 = vmatpush.bf16.msra.mxu0 %v543
    %673 = vmatpush.bf16.msra.mxu0 %v541
    %674 = vmatpush.bf16.msra.mxu0 %v539
    %675 = vmatmul.bf16.gmra.mxu0 %v273
    %v676 = vpop.f32.mrf.mxu0
    %v677 = vadd.f32 %v343, %v676
    %v678 = vpop.f32.mrf.mxu0
    %v679 = vadd.f32 %v343, %v678
    %680 = vdwg.mxu0
    %681 = vmatpush.bf16.msra.mxu0 %v569
    %682 = vmatpush.bf16.msra.mxu0 %v567
    %683 = vmatpush.bf16.msra.mxu0 %v565
    %684 = vmatpush.bf16.msra.mxu0 %v563
    %685 = vmatpush.bf16.msra.mxu0 %v561
    %686 = vmatpush.bf16.msra.mxu0 %v559
    %687 = vmatpush.bf16.msra.mxu0 %v557
    %688 = vmatpush.bf16.msra.mxu0 %v555
    %689 = vmatmul.bf16.gmra.mxu0 %v274
    %v690 = vpop.f32.mrf.mxu0
    %v691 = vadd.f32 %v677, %v690
    %v692 = vpop.f32.mrf.mxu0
    %v693 = vadd.f32 %v679, %v692
    %694 = vdwg.mxu0
    %695 = vmatpush.bf16.msra.mxu0 %v585
    %696 = vmatpush.bf16.msra.mxu0 %v583
    %697 = vmatpush.bf16.msra.mxu0 %v581
    %698 = vmatpush.bf16.msra.mxu0 %v579
    %699 = vmatpush.bf16.msra.mxu0 %v577
    %700 = vmatpush.bf16.msra.mxu0 %v575
    %701 = vmatpush.bf16.msra.mxu0 %v573
    %702 = vmatpush.bf16.msra.mxu0 %v571
    %703 = vmatmul.bf16.gmra.mxu0 %v275
    %v704 = vpop.f32.mrf.mxu0
    %v705 = vadd.f32 %v691, %v704
    %v706 = vpop.f32.mrf.mxu0
    %v707 = vadd.f32 %v693, %v706
    %708 = vdwg.mxu0
    %709 = vmatpush.bf16.msra.mxu0 %v601
    %710 = vmatpush.bf16.msra.mxu0 %v599
    %711 = vmatpush.bf16.msra.mxu0 %v597
    %712 = vmatpush.bf16.msra.mxu0 %v595
    %713 = vmatpush.bf16.msra.mxu0 %v593
    %714 = vmatpush.bf16.msra.mxu0 %v591
    %715 = vmatpush.bf16.msra.mxu0 %v589
    %716 = vmatpush.bf16.msra.mxu0 %v587
    %717 = vmatmul.bf16.gmra.mxu0 %v276
    %v718 = vpop.f32.mrf.mxu0
    %v719 = vadd.f32 %v705, %v718
    %v720 = vpop.f32.mrf.mxu0
    %v721 = vadd.f32 %v707, %v720
    %722 = vdwg.mxu0
    %723 = vmatpush.bf16.msra.mxu0 %v554
    %724 = vmatpush.bf16.msra.mxu0 %v552
    %725 = vmatpush.bf16.msra.mxu0 %v550
    %726 = vmatpush.bf16.msra.mxu0 %v548
    %727 = vmatpush.bf16.msra.mxu0 %v546
    %728 = vmatpush.bf16.msra.mxu0 %v544
    %729 = vmatpush.bf16.msra.mxu0 %v542
    %730 = vmatpush.bf16.msra.mxu0 %v540
    %731 = vmatmul.bf16.gmra.mxu0 %v273
    %v732 = vpop.f32.mrf.mxu0
    %v733 = vadd.f32 %v344, %v732
    %v734 = vpop.f32.mrf.mxu0
    %v735 = vadd.f32 %v344, %v734
    %736 = vdwg.mxu0
    %737 = vmatpush.bf16.msra.mxu0 %v570
    %738 = vmatpush.bf16.msra.mxu0 %v568
    %739 = vmatpush.bf16.msra.mxu0 %v566
    %740 = vmatpush.bf16.msra.mxu0 %v564
    %741 = vmatpush.bf16.msra.mxu0 %v562
    %742 = vmatpush.bf16.msra.mxu0 %v560
    %743 = vmatpush.bf16.msra.mxu0 %v558
    %744 = vmatpush.bf16.msra.mxu0 %v556
    %745 = vmatmul.bf16.gmra.mxu0 %v274
    %v746 = vpop.f32.mrf.mxu0
    %v747 = vadd.f32 %v733, %v746
    %v748 = vpop.f32.mrf.mxu0
    %v749 = vadd.f32 %v735, %v748
    %750 = vdwg.mxu0
    %751 = vmatpush.bf16.msra.mxu0 %v586
    %752 = vmatpush.bf16.msra.mxu0 %v584
    %753 = vmatpush.bf16.msra.mxu0 %v582
    %754 = vmatpush.bf16.msra.mxu0 %v580
    %755 = vmatpush.bf16.msra.mxu0 %v578
    %756 = vmatpush.bf16.msra.mxu0 %v576
    %757 = vmatpush.bf16.msra.mxu0 %v574
    %758 = vmatpush.bf16.msra.mxu0 %v572
    %759 = vmatmul.bf16.gmra.mxu0 %v275
    %v760 = vpop.f32.mrf.mxu0
    %v761 = vadd.f32 %v747, %v760
    %v762 = vpop.f32.mrf.mxu0
    %v763 = vadd.f32 %v749, %v762
    %764 = vdwg.mxu0
    %765 = vmatpush.bf16.msra.mxu0 %v602
    %766 = vmatpush.bf16.msra.mxu0 %v600
    %767 = vmatpush.bf16.msra.mxu0 %v598
    %768 = vmatpush.bf16.msra.mxu0 %v596
    %769 = vmatpush.bf16.msra.mxu0 %v594
    %770 = vmatpush.bf16.msra.mxu0 %v592
    %771 = vmatpush.bf16.msra.mxu0 %v590
    %772 = vmatpush.bf16.msra.mxu0 %v588
    %773 = vmatmul.bf16.gmra.mxu0 %v276
    %v774 = vpop.f32.mrf.mxu0
    %v775 = vadd.f32 %v761, %v774
    %v776 = vpop.f32.mrf.mxu0
    %v777 = vadd.f32 %v763, %v776
    %778 = vdwg.mxu0
    %v779 = vmax.f32 %v719, 0.0
    %v780 = vmax.f32 %v775, 0.0
    %v781 = vmax.f32 %v721, 0.0
    %v782 = vmax.f32 %v777, 0.0
    %v783 = vpack.c.bf16 %v781, %v779
    %v784 = vpack.c.bf16 %v782, %v780
    %v785 = vld [vmem:[#allocation6] sm:$0xf]
    %v786 = vld [vmem:[#allocation6 + $0x4] sm:$0xf]
    %v787 = vld [vmem:[#allocation6 + $0x8] sm:$0xf]
    %v788 = vld [vmem:[#allocation6 + $0xc] sm:$0xf]
    %v789 = vld [vmem:[#allocation6 + $0x10] sm:$0xf]
    %v790 = vld [vmem:[#allocation6 + $0x14] sm:$0xf]
    %v791 = vld [vmem:[#allocation6 + $0x18] sm:$0xf]
    %v792 = vld [vmem:[#allocation6 + $0x1c] sm:$0xf]
    %v793 = vld [vmem:[#allocation6 + $0x20] sm:$0xf]
    %v794 = vld [vmem:[#allocation6 + $0x24] sm:$0xf]
    %v795 = vld [vmem:[#allocation6 + $0x28] sm:$0xf]
    %v796 = vld [vmem:[#allocation6 + $0x2c] sm:$0xf]
    %v797 = vld [vmem:[#allocation6 + $0x30] sm:$0xf]
    %v798 = vld [vmem:[#allocation6 + $0x34] sm:$0xf]
    %v799 = vld [vmem:[#allocation6 + $0x38] sm:$0xf]
    %v800 = vld [vmem:[#allocation6 + $0x3c] sm:$0xf]
    %v801 = vld [vmem:[#allocation6 + $0x40] sm:$0xf]
    %v802 = vld [vmem:[#allocation6 + $0x44] sm:$0xf]
    %v803 = vld [vmem:[#allocation6 + $0x48] sm:$0xf]
    %v804 = vld [vmem:[#allocation6 + $0x4c] sm:$0xf]
    %v805 = vld [vmem:[#allocation6 + $0x50] sm:$0xf]
    %v806 = vld [vmem:[#allocation6 + $0x54] sm:$0xf]
    %v807 = vld [vmem:[#allocation6 + $0x58] sm:$0xf]
    %v808 = vld [vmem:[#allocation6 + $0x5c] sm:$0xf]
    %v809 = vld [vmem:[#allocation6 + $0x60] sm:$0xf]
    %v810 = vld [vmem:[#allocation6 + $0x64] sm:$0xf]
    %v811 = vld [vmem:[#allocation6 + $0x68] sm:$0xf]
    %v812 = vld [vmem:[#allocation6 + $0x6c] sm:$0xf]
    %v813 = vld [vmem:[#allocation6 + $0x70] sm:$0xf]
    %v814 = vld [vmem:[#allocation6 + $0x74] sm:$0xf]
    %v815 = vld [vmem:[#allocation6 + $0x78] sm:$0xf]
    %v816 = vld [vmem:[#allocation6 + $0x7c] sm:$0xf]
    %v817 = vld [vmem:[%s6] sm:$0x1]
    %v819 = vperm.slane %v817, 0
    %v853 = vunpack.c.l.b16 %v785
    %v854 = vunpack.c.l.b16 %v786
    %v855 = vunpack.c.l.b16 %v787
    %v856 = vunpack.c.l.b16 %v788
    %v857 = vunpack.c.l.b16 %v789
    %v858 = vunpack.c.l.b16 %v790
    %v859 = vunpack.c.l.b16 %v791
    %v860 = vunpack.c.l.b16 %v792
    %v861 = vunpack.c.l.b16 %v793
    %v862 = vunpack.c.l.b16 %v794
    %v863 = vunpack.c.l.b16 %v795
    %v864 = vunpack.c.l.b16 %v796
    %v865 = vunpack.c.l.b16 %v797
    %v866 = vunpack.c.l.b16 %v798
    %v867 = vunpack.c.l.b16 %v799
    %v868 = vunpack.c.l.b16 %v800
    %v869 = vunpack.c.l.b16 %v801
    %v870 = vunpack.c.l.b16 %v802
    %v871 = vunpack.c.l.b16 %v803
    %v872 = vunpack.c.l.b16 %v804
    %v873 = vunpack.c.l.b16 %v805
    %v874 = vunpack.c.l.b16 %v806
    %v875 = vunpack.c.l.b16 %v807
    %v876 = vunpack.c.l.b16 %v808
    %v877 = vunpack.c.l.b16 %v809
    %v878 = vunpack.c.l.b16 %v810
    %v879 = vunpack.c.l.b16 %v811
    %v880 = vunpack.c.l.b16 %v812
    %v881 = vunpack.c.l.b16 %v813
    %v882 = vunpack.c.l.b16 %v814
    %v883 = vunpack.c.l.b16 %v815
    %v884 = vunpack.c.l.b16 %v816
    %v885 = vpack.c.b16 %v854, %v853
    %v886 = vpack.c.b16 %v856, %v855
    %v887 = vpack.c.b16 %v858, %v857
    %v888 = vpack.c.b16 %v860, %v859
    %v889 = vpack.c.b16 %v862, %v861
    %v890 = vpack.c.b16 %v864, %v863
    %v891 = vpack.c.b16 %v866, %v865
    %v892 = vpack.c.b16 %v868, %v867
    %v893 = vpack.c.b16 %v870, %v869
    %v894 = vpack.c.b16 %v872, %v871
    %v895 = vpack.c.b16 %v874, %v873
    %v896 = vpack.c.b16 %v876, %v875
    %v897 = vpack.c.b16 %v878, %v877
    %v898 = vpack.c.b16 %v880, %v879
    %v899 = vpack.c.b16 %v882, %v881
    %v900 = vpack.c.b16 %v884, %v883
    %917 = vmatpush.bf16.msra.mxu0 %v892
    %918 = vmatpush.bf16.msra.mxu0 %v891
    %919 = vmatpush.bf16.msra.mxu0 %v890
    %920 = vmatpush.bf16.msra.mxu0 %v889
    %921 = vmatpush.bf16.msra.mxu0 %v888
    %922 = vmatpush.bf16.msra.mxu0 %v887
    %923 = vmatpush.bf16.msra.mxu0 %v886
    %924 = vmatpush.bf16.msra.mxu0 %v885
    %925 = vmatmul.bf16.gmra.mxu0 %v783
    %v926 = vpop.f32.mrf.mxu0
    %v927 = vadd.f32 %v819, %v926
    %v928 = vpop.f32.mrf.mxu0
    %v929 = vadd.f32 %v819, %v928
    %930 = vdwg.mxu0
    %931 = vmatpush.bf16.msra.mxu0 %v900
    %932 = vmatpush.bf16.msra.mxu0 %v899
    %933 = vmatpush.bf16.msra.mxu0 %v898
    %934 = vmatpush.bf16.msra.mxu0 %v897
    %935 = vmatpush.bf16.msra.mxu0 %v896
    %936 = vmatpush.bf16.msra.mxu0 %v895
    %937 = vmatpush.bf16.msra.mxu0 %v894
    %938 = vmatpush.bf16.msra.mxu0 %v893
    %939 = vmatmul.bf16.gmra.mxu0 %v784
    %v940 = vpop.f32.mrf.mxu0
    %v941 = vadd.f32 %v927, %v940
    %v942 = vpop.f32.mrf.mxu0
    %v943 = vadd.f32 %v929, %v942
    %944 = vdwg.mxu0
    %v945 = vmax.f32 %v941, 0.0
    %v946 = vmax.f32 %v943, 0.0
    %v947 = vpack.c.bf16 %v946, %v945
    %v948 = vld [vmem:[#allocation7] sm:$0xf]
    %v949 = vld [vmem:[#allocation7 + $0x4] sm:$0xf]
    %v950 = vld [vmem:[#allocation7 + $0x8] sm:$0xf]
    %v951 = vld [vmem:[#allocation7 + $0xc] sm:$0xf]
    %v952 = vld [vmem:[#allocation7 + $0x10] sm:$0xf]
    %v953 = vld [vmem:[#allocation7 + $0x14] sm:$0xf]
    %v954 = vld [vmem:[#allocation7 + $0x18] sm:$0xf]
    %v955 = vld [vmem:[#allocation7 + $0x1c] sm:$0xf]
    %v956 = vld [vmem:[#allocation7 + $0x20] sm:$0xf]
    %v957 = vld [vmem:[#allocation7 + $0x24] sm:$0xf]
    %v958 = vld [vmem:[#allocation7 + $0x28] sm:$0xf]
    %v959 = vld [vmem:[#allocation7 + $0x2c] sm:$0xf]
    %v960 = vld [vmem:[#allocation7 + $0x30] sm:$0xf]
    %v961 = vld [vmem:[#allocation7 + $0x34] sm:$0xf]
    %v962 = vld [vmem:[#allocation7 + $0x38] sm:$0xf]
    %v963 = vld [vmem:[#allocation7 + $0x3c] sm:$0xf]
    %v964 = vld [vmem:[%s8] sm:$0x1]
    %v966 = vperm.slane %v964, 0
    %v984 = vunpack.c.l.b16 %v948
    %v985 = vunpack.c.l.b16 %v949
    %v986 = vunpack.c.l.b16 %v950
    %v987 = vunpack.c.l.b16 %v951
    %v988 = vunpack.c.l.b16 %v952
    %v989 = vunpack.c.l.b16 %v953
    %v990 = vunpack.c.l.b16 %v954
    %v991 = vunpack.c.l.b16 %v955
    %v992 = vunpack.c.l.b16 %v956
    %v993 = vunpack.c.l.b16 %v957
    %v994 = vunpack.c.l.b16 %v958
    %v995 = vunpack.c.l.b16 %v959
    %v996 = vunpack.c.l.b16 %v960
    %v997 = vunpack.c.l.b16 %v961
    %v998 = vunpack.c.l.b16 %v962
    %v999 = vunpack.c.l.b16 %v963
    %v1000 = vpack.c.b16 %v985, %v984
    %v1001 = vpack.c.b16 %v987, %v986
    %v1002 = vpack.c.b16 %v989, %v988
    %v1003 = vpack.c.b16 %v991, %v990
    %v1004 = vpack.c.b16 %v993, %v992
    %v1005 = vpack.c.b16 %v995, %v994
    %v1006 = vpack.c.b16 %v997, %v996
    %v1007 = vpack.c.b16 %v999, %v998
    %1016 = vmatpush.bf16.msra.mxu0 %v1007
    %1017 = vmatpush.bf16.msra.mxu0 %v1006
    %1018 = vmatpush.bf16.msra.mxu0 %v1005
    %1019 = vmatpush.bf16.msra.mxu0 %v1004
    %1020 = vmatpush.bf16.msra.mxu0 %v1003
    %1021 = vmatpush.bf16.msra.mxu0 %v1002
    %1022 = vmatpush.bf16.msra.mxu0 %v1001
    %1023 = vmatpush.bf16.msra.mxu0 %v1000
    %1024 = vmatmul.bf16.gmra.mxu0 %v947
    %v1025 = vpop.f32.mrf.mxu0
    %v1026 = vadd.f32 %v966, %v1025
    %v1027 = vpop.f32.mrf.mxu0
    %v1028 = vadd.f32 %v966, %v1027
    %1029 = vdwg.mxu0
    %v1030 = vpack.c.bf16 %v1026, %v1026
    %v1031 = vpack.c.bf16 %v1028, %v1028
    %1032 = vst [vmem:[%s9] sm:$0xf] %v1030
    %1033 = vst [vmem:[%s9 + $0x4] sm:$0xf] %v1031
    // Predicated region
    $region54: #{mlp_forward.1} parent=1 // pred_check
      _
    $region55: #{mlp_forward.1} parent=1 // pred_check_branch
      %1035 = sbr.rel (0) target = $region57
    $region56: #{mlp_forward.1} parent=1 // pred_region
      _
    $region57: #{mlp_forward.1} parent=1 // pred_fallthru
      _
    // Predicated region
    $region58: #{mlp_forward.1} parent=1 // pred_check
      _
    $region59: #{mlp_forward.1} parent=1 // pred_check_branch
      %1037 = sbr.rel (0) target = $region61
    $region60: #{mlp_forward.1} parent=1 // pred_region
      _
    $region61: #{mlp_forward.1} parent=1 // pred_fallthru
      _
    %1038 = vsyncpa [#allocation3], 1
    %1039 = vsyncpa [#allocation5], 1
    %1040 = vsyncpa [#allocation8], 1

</llo_original>
